<compile_context>
chip_gen: v6e
topology: v6e:2x2x1
jax: 0.10.0
libtpu: 0.0.40
codegen_flags: <defaults>
</compile_context>

<pallas_src>
import jax
import jax.numpy as jnp
from jax.experimental import pallas as pl
from jax.experimental.pallas import tpu as pltpu

DELTA = 1e-5


def _round_up(a, b):
    return ((a + b - 1) // b) * b


def _propotion_loss_kernel(x_ref, gts_ref, out_ref, acc_ref):
    # x_ref:   (C, TILE_N) f32 in VMEM  -- current batch tile (lane-dense)
    # gts_ref: (C, 1)      f32 in VMEM  -- pre-normalized proportions
    # out_ref: (1, 1)      f32 in VMEM  -- scalar loss (written on last step)
    # acc_ref: (C, 1)      f32 VMEM scratch -- running per-class sum
    i = pl.program_id(0)

    @pl.when(i == 0)
    def _init():
        acc_ref[...] = jnp.zeros_like(acc_ref)

    # Hot path: cross-lane reduce of this tile (XLU) + accumulate (VPU).
    acc_ref[...] += jnp.sum(x_ref[...], axis=-1, keepdims=True)

    @pl.when(i == pl.num_programs(0) - 1)
    def _epilogue():
        col_sum = acc_ref[...]                               # (C, 1) == input.sum(dim=0)
        total = jnp.sum(col_sum, axis=0, keepdims=True)      # (1, 1) == input.sum()
        prop = col_sum / total                               # (C, 1)
        terms = -jnp.log(prop + DELTA) * gts_ref[...]        # (C, 1)
        num_classes = terms.shape[0]
        out_ref[...] = jnp.sum(terms, axis=0, keepdims=True) / num_classes  # (1, 1)


def _propotion_loss_jax(x, gts_norm):
    """Pure-JAX path for tiny batches (XLA fuses this; kernel launch not worth it)."""
    out = x.sum(axis=0)
    out = out / x.sum()
    return jnp.mean(-jnp.log(out + DELTA) * gts_norm)


def propotion_loss(x, propotion_vec, *, tile_n=65536, min_rows_for_kernel=1024,
                   force_kernel=False):
    """x: (N, C) float array; propotion_vec: (C,) float array (unnormalized)."""
    x = x.astype(jnp.float32)
    N, C = x.shape

    gts = propotion_vec.astype(jnp.float32)
    gts_norm = gts / jnp.sum(gts)                            # hoisted out of the kernel

    if N < min_rows_for_kernel and not force_kernel:
        return _propotion_loss_jax(x, gts_norm)

    # Lane-dense layout plumbing: one XLA transpose, batch axis -> lanes.
    xt = x.T                                                 # (C, N)

    tile = min(tile_n, _round_up(N, 128))                    # multiple of 128
    n_pad = _round_up(N, tile)
    if n_pad != N:
        # zero padding contributes 0 to every sum -> result unchanged
        xt = jnp.pad(xt, ((0, 0), (0, n_pad - N)))
    grid = (n_pad // tile,)

    gts_col = gts_norm.reshape(C, 1)

    out = pl.pallas_call(
        _propotion_loss_kernel,
        out_shape=jax.ShapeDtypeStruct((1, 1), jnp.float32),
        grid_spec=pltpu.PrefetchScalarGridSpec(
            num_scalar_prefetch=0,
            grid=grid,
            in_specs=[
                pl.BlockSpec((C, tile), lambda i: (0, i)),   # batch tiles, pipelined
                pl.BlockSpec((C, 1), lambda i: (0, 0)),      # stays resident
            ],
            out_specs=pl.BlockSpec((1, 1), lambda i: (0, 0)),
            scratch_shapes=[pltpu.VMEM((C, 1), jnp.float32)],
        ),
        compiler_params=pltpu.CompilerParams(
            dimension_semantics=("arbitrary",),              # reduction axis
            vmem_limit_bytes=32 * 1024 * 1024,               # headroom vs v7x 64 MiB
        ),
        cost_estimate=pl.CostEstimate(
            flops=int(N) * int(C),
            transcendentals=int(C),
            bytes_accessed=int(N) * int(C) * 4,
        ),
    )(xt, gts_col)
    return out[0, 0]


def propotion_loss_ref(x, propotion_vec):
    """Pure-JAX reference mirroring the PyTorch forward."""
    x = x.astype(jnp.float32)
    out = x.sum(axis=0)
    out = out / x.sum()
    gts = propotion_vec.astype(jnp.float32)
    gts = gts / gts.sum()
    return jnp.mean(-jnp.log(out + DELTA) * gts)


if __name__ == "__main__":
    key = jax.random.PRNGKey(0)
    k1, k2 = jax.random.split(key)

    # propotion dict {'0': .., '1': .., '2': ..} -> deterministic vector
    propotion = jnp.array([0.2, 0.3, 0.5], dtype=jnp.float32)

    # Case 1: single-tile kernel path (small batch, kernel forced on).
    x1 = jax.random.uniform(k1, (256, 3), dtype=jnp.float32, minval=0.05, maxval=1.0)
    loss1 = jax.block_until_ready(propotion_loss(x1, propotion, force_kernel=True))
    ref1 = propotion_loss_ref(x1, propotion)
    assert jnp.allclose(loss1, ref1, rtol=1e-5, atol=1e-6), (loss1, ref1)

    # Case 2: multi-step grid (exercises accumulator + zero padding), tiny tile.
    x2 = jax.random.uniform(k2, (300, 3), dtype=jnp.float32, minval=0.05, maxval=1.0)
    loss2 = jax.block_until_ready(
        propotion_loss(x2, propotion, tile_n=128, force_kernel=True))
    ref2 = propotion_loss_ref(x2, propotion)
    assert jnp.allclose(loss2, ref2, rtol=1e-5, atol=1e-6), (loss2, ref2)

    # Case 3: tiny-batch fallback path (pure JAX).
    x3 = x1[:8]
    loss3 = jax.block_until_ready(propotion_loss(x3, propotion))
    ref3 = propotion_loss_ref(x3, propotion)
    assert jnp.allclose(loss3, ref3, rtol=1e-5, atol=1e-6), (loss3, ref3)

    print("KERNEL_OK")
</pallas_src>

<mosaic_0001>
module attributes {stable_mosaic.version = 11 : i64} {
  func.func @_propotion_loss_kernel(%arg0: i32, %arg1: memref<3x256xf32, #tpu.memory_space<vmem>>, %arg2: memref<3x1xf32, #tpu.memory_space<vmem>>, %arg3: memref<1x1xf32, #tpu.memory_space<vmem>>, %arg4: memref<3x1xf32, #tpu.memory_space<vmem>>) attributes {dimension_semantics = [#tpu.dimension_semantics<arbitrary>], iteration_bounds = array<i64: 1>, scalar_prefetch = 0 : i64, scratch_operands = 1 : i64, tpu.core_type = #tpu.core_type<tc>, window_params = [{transform_indices = @transform_0, window_bounds = array<i64: 3, 256>}, {pipeline_mode = #tpu.pipeline_mode<synchronous>, transform_indices = @transform_1, window_bounds = array<i64: 3, 1>}, {pipeline_mode = #tpu.pipeline_mode<synchronous>, transform_indices = @transform_2, window_bounds = array<i64: 1, 1>}]} {
    %c0_i32 = arith.constant 0 : i32
    %0 = arith.cmpi eq, %arg0, %c0_i32 : i32
    %1 = arith.extui %0 : i1 to i32
    %c0_i32_0 = arith.constant 0 : i32
    %2 = arith.cmpi ne, %1, %c0_i32_0 : i32
    scf.if %2 {
      %cst_8 = arith.constant 0.000000e+00 : f32
      %12 = vector.broadcast %cst_8 : f32 to vector<3x1xf32>
      %c0_9 = arith.constant 0 : index
      %c0_10 = arith.constant 0 : index
      %13 = vector.load %arg4[%c0_9, %c0_10] : memref<3x1xf32, #tpu.memory_space<vmem>>, vector<3x1xf32>
      tpu.vector_store %arg4[%c0_9, %c0_10], %12 {strides = array<i32>} : memref<3x1xf32, #tpu.memory_space<vmem>>, vector<3x1xf32>,
    } else {
    }
    %c0 = arith.constant 0 : index
    %c0_1 = arith.constant 0 : index
    %3 = vector.load %arg4[%c0, %c0_1] : memref<3x1xf32, #tpu.memory_space<vmem>>, vector<3x1xf32>
    %c0_2 = arith.constant 0 : index
    %c0_3 = arith.constant 0 : index
    %4 = vector.load %arg1[%c0_2, %c0_3] : memref<3x256xf32, #tpu.memory_space<vmem>>, vector<3x256xf32>
    %cst = arith.constant dense<0.000000e+00> : vector<3xf32>
    %5 = vector.multi_reduction <add>, %4, %cst [1] : vector<3x256xf32> to vector<3xf32>
    %6 = vector.shape_cast %5 : vector<3xf32> to vector<3x1xf32>
    %7 = arith.addf %3, %6 : vector<3x1xf32>
    %c0_4 = arith.constant 0 : index
    %c0_5 = arith.constant 0 : index
    %8 = vector.load %arg4[%c0_4, %c0_5] : memref<3x1xf32, #tpu.memory_space<vmem>>, vector<3x1xf32>
    tpu.vector_store %arg4[%c0_4, %c0_5], %7 {strides = array<i32>} : memref<3x1xf32, #tpu.memory_space<vmem>>, vector<3x1xf32>,
    %c0_i32_6 = arith.constant 0 : i32
    %9 = arith.cmpi eq, %arg0, %c0_i32_6 : i32
    %10 = arith.extui %9 : i1 to i32
    %c0_i32_7 = arith.constant 0 : i32
    %11 = arith.cmpi ne, %10, %c0_i32_7 : i32
    scf.if %11 {
      %c0_8 = arith.constant 0 : index
      %c0_9 = arith.constant 0 : index
      %12 = vector.load %arg4[%c0_8, %c0_9] : memref<3x1xf32, #tpu.memory_space<vmem>>, vector<3x1xf32>
      %cst_10 = arith.constant dense<0.000000e+00> : vector<1xf32>
      %13 = vector.multi_reduction <add>, %12, %cst_10 [0] : vector<3x1xf32> to vector<1xf32>
      %14 = vector.shape_cast %13 : vector<1xf32> to vector<1x1xf32>
      %15 = vector.broadcast %14 : vector<1x1xf32> to vector<3x1xf32>
      %16 = arith.divf %12, %15 : vector<3x1xf32>
      %cst_11 = arith.constant 9.99999974E-6 : f32
      %17 = vector.broadcast %cst_11 : f32 to vector<3x1xf32>
      %18 = arith.addf %16, %17 : vector<3x1xf32>
      %19 = math.log %18 : vector<3x1xf32>
      %cst_12 = arith.constant 0.000000e+00 : f32
      %20 = vector.broadcast %cst_12 : f32 to vector<3x1xf32>
      %21 = arith.subf %20, %19 : vector<3x1xf32>
      %c0_13 = arith.constant 0 : index
      %c0_14 = arith.constant 0 : index
      %22 = vector.load %arg2[%c0_13, %c0_14] : memref<3x1xf32, #tpu.memory_space<vmem>>, vector<3x1xf32>
      %23 = arith.mulf %21, %22 : vector<3x1xf32>
      %cst_15 = arith.constant dense<0.000000e+00> : vector<1xf32>
      %24 = vector.multi_reduction <add>, %23, %cst_15 [0] : vector<3x1xf32> to vector<1xf32>
      %25 = vector.shape_cast %24 : vector<1xf32> to vector<1x1xf32>
      %cst_16 = arith.constant 3.000000e+00 : f32
      %26 = vector.broadcast %cst_16 : f32 to vector<1x1xf32>
      %27 = arith.divf %25, %26 : vector<1x1xf32>
      %c0_17 = arith.constant 0 : index
      %c0_18 = arith.constant 0 : index
      %28 = vector.load %arg3[%c0_17, %c0_18] : memref<1x1xf32, #tpu.memory_space<vmem>>, vector<1x1xf32>
      tpu.vector_store %arg3[%c0_17, %c0_18], %27 {strides = array<i32>} : memref<1x1xf32, #tpu.memory_space<vmem>>, vector<1x1xf32>,
    } else {
    }
    return
  }
  func.func @transform_0(%arg0: i32) -> (i32, i32) {
    %c0_i32 = arith.constant 0 : i32
    %c0_i32_0 = arith.constant 0 : i32
    return %c0_i32, %arg0 : i32, i32
  }
  func.func @transform_1(%arg0: i32) -> (i32, i32) {
    %c0_i32 = arith.constant 0 : i32
    %c0_i32_0 = arith.constant 0 : i32
    %c0_i32_1 = arith.constant 0 : i32
    return %c0_i32, %c0_i32_0 : i32, i32
  }
  func.func @transform_2(%arg0: i32) -> (i32, i32) {
    %c0_i32 = arith.constant 0 : i32
    %c0_i32_0 = arith.constant 0 : i32
    %c0_i32_1 = arith.constant 0 : i32
    return %c0_i32, %c0_i32_0 : i32, i32
  }
}

</mosaic_0001>

<llo_original>
// kernel: tpu_custom_call.1
$region0: #{tpu_custom_call.1}
  #allocation0 [shape = 'u32[]', space=smem, size = 0x4, offset = 0x4, fixed_abs, tag = 'smem constant byte address 0x4 - core index']
  #allocation1 [shape = 'u32[144,128]{1,0:T(1,128)}', space=vmem, size = 0x12000, scoped, tag = 'internal scratch']
  #allocation2 [shape = 'f32[3,1]{1,0:T(4,128)}', space=vmem, size = 0x800, scoped, tag = 'scratch operand']
  %s0 = inlined_call_operand.hbm [shape: f32[3,256], index: 0, kind: input, shape index: {}]
  %s1 = inlined_call_operand.vmem [shape: f32[3,1], index: 1, kind: input, shape index: {}]
  %s2 = inlined_call_operand.hbm [shape: f32[1,1], index: 2, kind: output, shape index: {}]
  %s3 = sld [smem:[#allocation0]]
  $region30: #{tpu_custom_call.1} parent=0
    _
  %s5 = ssub.s32 1, %s3
  %s6 = scalar_select 0, %s5, %s3
  $region1: #{tpu_custom_call.1} parent=0
    #allocation3 [shape = 'u8[4096]{0}', space=vmem, size = 0x1000, scoped, tag = 'input window, operand 0, single buffered']
    #allocation4 [shape = 's32[1]{0}', space=sflag, size = 0x4, scoped, tag = 'scoped memory for tpu_custom_call.1']
    #allocation5 [shape = 's32[1]{0}', space=sflag, size = 0x4, scoped, tag = 'scoped memory for tpu_custom_call.1']
    #allocation6 [shape = 'u8[512]{0}', space=vmem, size = 0x400, scoped, tag = 'output window, operand 0, single buffered']
    %7 = vsyncpa [#allocation4], 0
    %8 = vsyncpa [#allocation5], 0
    // Predicated region
    $region2: #{tpu_custom_call.1} parent=1 // pred_check
      _
    $region3: #{tpu_custom_call.1} parent=1 // pred_check_branch
      %10 = sbr.rel (0) target = $region5
    $region4: #{tpu_custom_call.1} parent=1 // pred_region
      %s12 = ssub.s32 128, 128
      %13 = vsyncadd [#allocation4], %s12
      %s15 = sshll.u32 [#allocation3], 4
      %s16 = int_to_ptr.vmem [resolvable:$true] %s15
      %18 = dma.hbm_to_vmem [thread:$0]  %s0, 128, %s16, [#allocation4]
    $region5: #{tpu_custom_call.1} parent=1 // pred_fallthru
      _
    // Predicated region
    $region6: #{tpu_custom_call.1} parent=1 // pred_check
      _
    $region7: #{tpu_custom_call.1} parent=1 // pred_check_branch
      %20 = sbr.rel (0) target = $region9
    $region8: #{tpu_custom_call.1} parent=1 // pred_region
      _
    $region9: #{tpu_custom_call.1} parent=1 // pred_fallthru
      _
    // Predicated region
    $region10: #{tpu_custom_call.1} parent=1 // pred_check
      _
    $region11: #{tpu_custom_call.1} parent=1 // pred_check_branch
      %22 = sbr.rel (0) target = $region13
    $region12: #{tpu_custom_call.1} parent=1 // pred_region
      %23 = dma.done [#allocation4], 128
    $region13: #{tpu_custom_call.1} parent=1 // pred_fallthru
      _
    %p24 = scmp.eq.s32.totalorder 0, 0
    // Predicated region
    $region14: #{tpu_custom_call.1} parent=1 // pred_check
      %p25 = pneg %p24
    $region15: #{tpu_custom_call.1} parent=1 // pred_check_branch
      %27 = sbr.rel (%p25) target = $region17
    $region16: #{tpu_custom_call.1} parent=1 // pred_region
      %vm28 = vcmask 2048
      %29 = vst.msk [vmem:[#allocation2] sm:$0x7] %vm28, 0.0
    $region17: #{tpu_custom_call.1} parent=1 // pred_fallthru
      _
    %v30 = vld [vmem:[#allocation2] sm:$0x7]
    %v31 = vld [vmem:[#allocation3] sm:$0x77]
    %v33 = vcombine.high %v31, %v31
    %vm35 = vcmask 1042432
    %v36 = vsel %vm35, %v31, 0.0
    %v37 = vsel %vm35, %v33, 0.0
    %v38 = vadd.f32 %v36, %v37
    %39 = vadd.xlane.f32.xlu0 %v38
    %v40 = vpop.xlane.xlu0 %39
    %v41 = vadd.f32 %v30, %v40
    %vm42 = vcmask 2048
    %43 = vst.msk [vmem:[#allocation2] sm:$0x7] %vm42, %v41
    // Predicated region
    $region18: #{tpu_custom_call.1} parent=1 // pred_check
      %p44 = pneg %p24
    $region19: #{tpu_custom_call.1} parent=1 // pred_check_branch
      %46 = sbr.rel (%p44) target = $region21
    $region20: #{tpu_custom_call.1} parent=1 // pred_region
      %v47 = vld [vmem:[#allocation2] sm:$0x7]
      %v48 = vsel %vm42, %v47, 0.0
      %v49 = vrot.slane %v48, 4
      %v50 = vadd.f32 %v48, %v49
      %v51 = vrot.slane %v50, 2
      %v52 = vadd.f32 %v50, %v51
      %v53 = vrot.slane %v52, 1
      %v54 = vadd.f32 %v52, %v53
      %v55 = vrcp.pop %v54
      %v56 = vmul.f32 %v47, %v55
      %v57 = vadd.f32 %v56, 1e-05
      %v58 = vlog2.pop %v57
      %v59 = vmul.f32 %v58, 0.6931472
      %v60 = vsub.f32 0.0, %v59
      %v61 = vld [vmem:[%s1] sm:$0x7]
      %v62 = vmul.f32 %v60, %v61
      %v63 = vsel %vm42, %v62, 0.0
      %v64 = vrot.slane %v63, 4
      %v65 = vadd.f32 %v63, %v64
      %v66 = vrot.slane %v65, 2
      %v67 = vadd.f32 %v65, %v66
      %v68 = vrot.slane %v67, 1
      %v69 = vadd.f32 %v67, %v68
      %v70 = vrcp.pop 3.0
      %v71 = vmul.f32 %v69, %v70
      %vm72 = vcmask 0
      %73 = vst.msk [vmem:[#allocation6] sm:$0x1] %vm72, %v71
    $region21: #{tpu_custom_call.1} parent=1 // pred_fallthru
      _
    // Predicated region
    $region22: #{tpu_custom_call.1} parent=1 // pred_check
      _
    $region23: #{tpu_custom_call.1} parent=1 // pred_check_branch
      %75 = sbr.rel (0) target = $region25
    $region24: #{tpu_custom_call.1} parent=1 // pred_region
      %s77 = ssub.s32 16, 16
      %78 = vsyncadd [#allocation5], %s77
      %s80 = sshll.u32 [#allocation6], 4
      %s81 = int_to_ptr.vmem [resolvable:$true] %s80
      %83 = dma.vmem_to_hbm [thread:$0]  %s81, 16, %s2, [#allocation5]
    $region25: #{tpu_custom_call.1} parent=1 // pred_fallthru
      _
    // Predicated region
    $region26: #{tpu_custom_call.1} parent=1 // pred_check
      _
    $region27: #{tpu_custom_call.1} parent=1 // pred_check_branch
      %85 = sbr.rel (0) target = $region29
    $region28: #{tpu_custom_call.1} parent=1 // pred_region
      %86 = dma.done [#allocation5], 16
    $region29: #{tpu_custom_call.1} parent=1 // pred_fallthru
      _
    %87 = vsyncpa [#allocation4], 1
    %88 = vsyncpa [#allocation5], 1

</llo_original>
